<compile_context>
chip_gen: v7x
topology: tpu7x:2x2x1
jax: 0.10.0
libtpu: 0.0.40
codegen_flags: <defaults>
</compile_context>

<pallas_src>
import jax
import jax.numpy as jnp
from jax.experimental import pallas as pl
from jax.experimental.pallas import tpu as pltpu


def _round_up(x, m):
    return ((x + m - 1) // m) * m


def _make_mlp_kernel(use_vpu_head: bool, lane_dense: bool):
    def kernel(x_ref, w1_ref, b1_ref, w2_ref, b2_ref, w3_ref, b3_ref,
               w4_ref, b4_ref, o_ref, acc_ref):
        k = pl.program_id(1)

        @pl.when(k == 0)
        def _init():
            acc_ref[...] = jnp.zeros_like(acc_ref)

        # Layer 0 partial sum: x_tile @ W1_ktile, f32 accumulation on the MXU.
        acc_ref[...] += jnp.dot(x_ref[...], w1_ref[...],
                                preferred_element_type=jnp.float32)

        @pl.when(k == pl.num_programs(1) - 1)
        def _finish():
            cdt = w2_ref.dtype  # bf16 MXU operand dtype

            h = jnp.maximum(acc_ref[...] + b1_ref[...], 0.0)

            h = jnp.dot(h.astype(cdt), w2_ref[...],
                        preferred_element_type=jnp.float32)
            h = jnp.maximum(h + b2_ref[...], 0.0)

            h = jnp.dot(h.astype(cdt), w3_ref[...],
                        preferred_element_type=jnp.float32)
            h = jnp.maximum(h + b3_ref[...], 0.0)

            if use_vpu_head:
                # num_classes == 1: w4_ref holds W4.T as [1, d3] in f32.
                # VPU multiply + XLU lane reduce keeps the MXU issue slot free.
                if lane_dense:
                    g = o_ref.shape[0]                     # == tb // 128
                    # Sublane regroup (row-major identical data order), then
                    # lane reduce -> lane-dense (g, 128) block, unmasked store.
                    h3 = h.reshape(g, 128, h.shape[-1])
                    out = jnp.sum(h3 * w4_ref[...], axis=-1) + b4_ref[...]
                else:
                    out = (jnp.sum(h * w4_ref[...], axis=-1, keepdims=True)
                           + b4_ref[...])
            else:
                out = jnp.dot(h.astype(cdt), w4_ref[...],
                              preferred_element_type=jnp.float32) + b4_ref[...]

            o_ref[...] = out.astype(o_ref.dtype)

    return kernel


def mlp_three_layer_forward(x, params, *, batch_tile=None,
                            compute_dtype=jnp.bfloat16):
    """Fused forward pass of MLPThreeLayer.

    x: [B, n_inp]
    params: w1[n_inp,d1], b1[1,d1], w2[d1,d2], b2[1,d2], w3[d2,d3], b3[1,d3],
            w4[d3,nc], b4[1,nc]   (weights stored as PyTorch weight.T)
    """
    w1, b1, w2, b2, w3, b3, w4, b4 = (
        params[k] for k in ("w1", "b1", "w2", "b2", "w3", "b3", "w4", "b4"))
    B, n_inp = x.shape
    d1, d2, d3, nc = w1.shape[1], w2.shape[1], w3.shape[1], w4.shape[1]
    out_dtype = x.dtype

    # bf16 for the MXU operands; f32 biases.
    xc = x.astype(compute_dtype)
    w1c = w1.astype(compute_dtype)
    w2c = w2.astype(compute_dtype)
    w3c = w3.astype(compute_dtype)
    b1c, b2c, b3c, b4c = (b.astype(jnp.float32) for b in (b1, b2, b3, b4))

    use_vpu_head = (nc == 1)
    if use_vpu_head:
        # [d3, 1] -> [1, d3] (pure relabel, one dim is 1), kept f32.
        w4c = w4.astype(jnp.float32).reshape(1, d3)
    else:
        w4c = w4.astype(compute_dtype)

    # ---- K (n_inp) tiling: only split when the x slab would be large. ----
    k_eff = n_inp
    tk = k_eff if k_eff <= 1024 else 512
    if k_eff % tk:
        k_pad = _round_up(k_eff, tk) - k_eff
        xc = jnp.pad(xc, ((0, 0), (0, k_pad)))
        w1c = jnp.pad(w1c, ((0, k_pad), (0, 0)))
        k_eff += k_pad
    nk = k_eff // tk

    # ---- Batch tile: derived from a VMEM budget, not a fixed cap. --------
    # Per-row bytes: double-buffered bf16 x tile + f32 layer-1 accumulator +
    # transient f32/bf16 intermediates + double-buffered output.
    if batch_tile is not None:
        tb = batch_tile
    else:
        per_row = 4 * tk + 4 * d1 + 6 * (d1 + d2 + d3) + 8 * max(nc, 1)
        budget = 8 * 1024 * 1024          # conservative: safe on v5e/v6e/v7x
        cap = max(1024, min(8192, (budget // per_row) // 1024 * 1024))
        if B >= 1024:
            # Large batch: 1024-aligned tiles (lane-dense head + bf16 sublane
            # packing), evenly divided, >=2 tiles when B >= 2048 so v7x's two
            # TensorCores both get work.
            n_tiles = max(pl.cdiv(B, cap), 2 if B >= 2048 else 1)
            tb = min(cap, max(1024, _round_up(pl.cdiv(B, n_tiles), 1024)))
        else:
            tb = _round_up(B, 16)
            if B > 256:
                # Two tiles so v7x's second TensorCore is not idle.
                tb = max(128, _round_up(pl.cdiv(B, 2), 128))
    assert tb % 16 == 0, "batch_tile must be a multiple of 16 (bf16 sublanes)"

    Bp = _round_up(B, tb)
    if Bp != B:
        xc = jnp.pad(xc, ((0, Bp - B), (0, 0)))
    grid = (Bp // tb, nk)

    # Lane-dense output path for the single-logit head.
    lane_dense = use_vpu_head and (tb % 1024 == 0)
    if lane_dense:
        out_shape = jax.ShapeDtypeStruct((Bp // 128, 128), out_dtype)
        out_spec = pl.BlockSpec((tb // 128, 128), lambda i, k: (i, 0))
    else:
        out_shape = jax.ShapeDtypeStruct((Bp, nc), out_dtype)
        out_spec = pl.BlockSpec((tb, nc), lambda i, k: (i, 0))

    # Weights / biases are tiny -> resident full blocks every grid step.
    full = lambda a: pl.BlockSpec(a.shape, lambda i, k: (0, 0))

    flops = 2 * Bp * (k_eff * d1 + d1 * d2 + d2 * d3 + d3 * nc)
    nbytes = lambda a: a.size * a.dtype.itemsize
    bytes_accessed = (sum(nbytes(a) for a in
                          (xc, w1c, b1c, w2c, b2c, w3c, b3c, w4c, b4c))
                      + Bp * nc * jnp.dtype(out_dtype).itemsize)

    out = pl.pallas_call(
        _make_mlp_kernel(use_vpu_head, lane_dense),
        out_shape=out_shape,
        grid_spec=pltpu.PrefetchScalarGridSpec(
            num_scalar_prefetch=0,
            grid=grid,
            in_specs=[
                pl.BlockSpec((tb, tk), lambda i, k: (i, k)),   # pipelined x tile
                pl.BlockSpec((tk, d1), lambda i, k: (k, 0)),   # W1 K slice
                full(b1c),
                full(w2c), full(b2c),
                full(w3c), full(b3c),
                full(w4c), full(b4c),
            ],
            out_specs=out_spec,
            scratch_shapes=[pltpu.VMEM((tb, d1), jnp.float32)],  # layer-1 acc
        ),
        compiler_params=pltpu.CompilerParams(
            dimension_semantics=("parallel", "arbitrary"),
            vmem_limit_bytes=32 * 1024 * 1024,
        ),
        cost_estimate=pl.CostEstimate(
            flops=int(flops), transcendentals=0,
            bytes_accessed=int(bytes_accessed)),
    )(xc, w1c, b1c, w2c, b2c, w3c, b3c, w4c, b4c)

    if lane_dense:
        out = out.reshape(Bp, nc)
    return out[:B] if Bp != B else out


def init_params(key, n_inp, dims=(64, 32, 16), num_classes=1):
    """Deterministic init matching PyTorch Linear shapes, stored as [in, out]."""
    d1, d2, d3 = dims
    ks = jax.random.split(key, 8)

    def uniform(k, shape, fan_in):
        bound = 1.0 / jnp.sqrt(jnp.float32(fan_in))
        return jax.random.uniform(k, shape, jnp.float32, -bound, bound)

    return {
        "w1": uniform(ks[0], (n_inp, d1), n_inp),
        "b1": uniform(ks[1], (1, d1), n_inp),
        "w2": uniform(ks[2], (d1, d2), d1),
        "b2": uniform(ks[3], (1, d2), d1),
        "w3": uniform(ks[4], (d2, d3), d2),
        "b3": uniform(ks[5], (1, d3), d2),
        "w4": uniform(ks[6], (d3, num_classes), d3),
        "b4": uniform(ks[7], (1, num_classes), d3),
    }


def reference_forward(x, p):
    """Plain f32 reference (PyTorch semantics)."""
    h = jnp.maximum(x @ p["w1"] + p["b1"], 0.0)
    h = jnp.maximum(h @ p["w2"] + p["b2"], 0.0)
    h = jnp.maximum(h @ p["w3"] + p["b3"], 0.0)
    return h @ p["w4"] + p["b4"]


def emulated_kernel_reference(x, p, compute_dtype=jnp.bfloat16):
    """Mirrors the kernel's mixed precision (bf16 operands, f32 accumulate)."""
    c = lambda a: a.astype(compute_dtype).astype(jnp.float32)
    h = jnp.maximum(c(x) @ c(p["w1"]) + p["b1"], 0.0)
    h = jnp.maximum(c(h) @ c(p["w2"]) + p["b2"], 0.0)
    h = jnp.maximum(c(h) @ c(p["w3"]) + p["b3"], 0.0)
    if p["w4"].shape[1] == 1:
        w4t = p["w4"].astype(jnp.float32).reshape(1, -1)
        return jnp.sum(h * w4t, axis=-1, keepdims=True) + p["b4"]
    return c(h) @ c(p["w4"]) + p["b4"]


if __name__ == "__main__":
    key = jax.random.PRNGKey(0)
    k_x1, k_x2, k_p = jax.random.split(key, 3)

    n_inp = 32
    dims = (64, 32, 16)
    num_classes = 1
    params = init_params(k_p, n_inp, dims, num_classes)

    # 1) Tiny batch: single 16-row tile, column-output fallback path.
    x_small = jax.random.normal(k_x1, (8, n_inp), jnp.float32)
    out_small = jax.block_until_ready(mlp_three_layer_forward(x_small, params))
    assert out_small.shape == (8, num_classes)
    assert jnp.allclose(out_small, emulated_kernel_reference(x_small, params),
                        atol=1e-4, rtol=1e-4), "small-batch mismatch vs bf16-emulated reference"
    assert jnp.allclose(out_small, reference_forward(x_small, params),
                        atol=5e-2, rtol=5e-2), "small-batch mismatch vs f32 reference"

    # 2) Medium batch: two 256-row tiles -> exercises the pipelined batch grid
    #    and the megacore-parallel dimension.
    x_med = jax.random.normal(k_x2, (512, n_inp), jnp.float32)
    out_med = jax.block_until_ready(mlp_three_layer_forward(x_med, params))
    assert out_med.shape == (512, num_classes)
    assert jnp.allclose(out_med, emulated_kernel_reference(x_med, params),
                        atol=1e-4, rtol=1e-4), "medium-batch mismatch vs bf16-emulated reference"
    assert jnp.allclose(out_med, reference_forward(x_med, params),
                        atol=1e-1, rtol=1e-1), "medium-batch mismatch vs f32 reference"

    print("KERNEL_OK")
</pallas_src>

<mosaic_0001>
module attributes {stable_mosaic.version = 11 : i64} {
  func.func @kernel(%arg0: i32, %arg1: i32, %arg2: memref<16x32xbf16, #tpu.memory_space<vmem>>, %arg3: memref<32x64xbf16, #tpu.memory_space<vmem>>, %arg4: memref<1x64xf32, #tpu.memory_space<vmem>>, %arg5: memref<64x32xbf16, #tpu.memory_space<vmem>>, %arg6: memref<1x32xf32, #tpu.memory_space<vmem>>, %arg7: memref<32x16xbf16, #tpu.memory_space<vmem>>, %arg8: memref<1x16xf32, #tpu.memory_space<vmem>>, %arg9: memref<1x16xf32, #tpu.memory_space<vmem>>, %arg10: memref<1x1xf32, #tpu.memory_space<vmem>>, %arg11: memref<16x1xf32, #tpu.memory_space<vmem>>, %arg12: memref<16x64xf32, #tpu.memory_space<vmem>>) attributes {dimension_semantics = [#tpu.dimension_semantics<parallel>, #tpu.dimension_semantics<arbitrary>], iteration_bounds = array<i64: 1, 1>, scalar_prefetch = 0 : i64, scratch_operands = 1 : i64, tpu.core_type = #tpu.core_type<tc>, window_params = [{transform_indices = @transform_0, window_bounds = array<i64: 16, 32>}, {transform_indices = @transform_1, window_bounds = array<i64: 32, 64>}, {pipeline_mode = #tpu.pipeline_mode<synchronous>, transform_indices = @transform_2, window_bounds = array<i64: 1, 64>}, {pipeline_mode = #tpu.pipeline_mode<synchronous>, transform_indices = @transform_3, window_bounds = array<i64: 64, 32>}, {pipeline_mode = #tpu.pipeline_mode<synchronous>, transform_indices = @transform_4, window_bounds = array<i64: 1, 32>}, {pipeline_mode = #tpu.pipeline_mode<synchronous>, transform_indices = @transform_5, window_bounds = array<i64: 32, 16>}, {pipeline_mode = #tpu.pipeline_mode<synchronous>, transform_indices = @transform_6, window_bounds = array<i64: 1, 16>}, {pipeline_mode = #tpu.pipeline_mode<synchronous>, transform_indices = @transform_7, window_bounds = array<i64: 1, 16>}, {pipeline_mode = #tpu.pipeline_mode<synchronous>, transform_indices = @transform_8, window_bounds = array<i64: 1, 1>}, {transform_indices = @transform_9, window_bounds = array<i64: 16, 1>}]} {
    %c0_i32 = arith.constant 0 : i32
    %0 = arith.cmpi eq, %arg1, %c0_i32 : i32
    %1 = arith.extui %0 : i1 to i32
    %c0_i32_0 = arith.constant 0 : i32
    %2 = arith.cmpi ne, %1, %c0_i32_0 : i32
    scf.if %2 {
      %cst_10 = arith.constant 0.000000e+00 : f32
      %12 = vector.broadcast %cst_10 : f32 to vector<16x64xf32>
      %c0_11 = arith.constant 0 : index
      %c0_12 = arith.constant 0 : index
      %13 = vector.load %arg12[%c0_11, %c0_12] : memref<16x64xf32, #tpu.memory_space<vmem>>, vector<16x64xf32>
      tpu.vector_store %arg12[%c0_11, %c0_12], %12 {strides = array<i32>} : memref<16x64xf32, #tpu.memory_space<vmem>>, vector<16x64xf32>,
    } else {
    }
    %c0 = arith.constant 0 : index
    %c0_1 = arith.constant 0 : index
    %3 = vector.load %arg12[%c0, %c0_1] : memref<16x64xf32, #tpu.memory_space<vmem>>, vector<16x64xf32>
    %c0_2 = arith.constant 0 : index
    %c0_3 = arith.constant 0 : index
    %4 = vector.load %arg2[%c0_2, %c0_3] : memref<16x32xbf16, #tpu.memory_space<vmem>>, vector<16x32xbf16>
    %c0_4 = arith.constant 0 : index
    %c0_5 = arith.constant 0 : index
    %5 = vector.load %arg3[%c0_4, %c0_5] : memref<32x64xbf16, #tpu.memory_space<vmem>>, vector<32x64xbf16>
    %cst = arith.constant dense<0.000000e+00> : vector<16x64xf32>
    %6 = tpu.matmul %4, %5, %cst {dimension_numbers = #tpu.dot_dimension_numbers<[1], [0], [0], [1], [0, 0, 1, 1], [], []>} : vector<16x32xbf16>, vector<32x64xbf16>, vector<16x64xf32> -> vector<16x64xf32>
    %7 = arith.addf %3, %6 : vector<16x64xf32>
    %c0_6 = arith.constant 0 : index
    %c0_7 = arith.constant 0 : index
    %8 = vector.load %arg12[%c0_6, %c0_7] : memref<16x64xf32, #tpu.memory_space<vmem>>, vector<16x64xf32>
    tpu.vector_store %arg12[%c0_6, %c0_7], %7 {strides = array<i32>} : memref<16x64xf32, #tpu.memory_space<vmem>>, vector<16x64xf32>,
    %c0_i32_8 = arith.constant 0 : i32
    %9 = arith.cmpi eq, %arg1, %c0_i32_8 : i32
    %10 = arith.extui %9 : i1 to i32
    %c0_i32_9 = arith.constant 0 : i32
    %11 = arith.cmpi ne, %10, %c0_i32_9 : i32
    scf.if %11 {
      %c0_10 = arith.constant 0 : index
      %c0_11 = arith.constant 0 : index
      %12 = vector.load %arg12[%c0_10, %c0_11] : memref<16x64xf32, #tpu.memory_space<vmem>>, vector<16x64xf32>
      %c0_12 = arith.constant 0 : index
      %c0_13 = arith.constant 0 : index
      %13 = vector.load %arg4[%c0_12, %c0_13] : memref<1x64xf32, #tpu.memory_space<vmem>>, vector<1x64xf32>
      %14 = vector.broadcast %13 : vector<1x64xf32> to vector<16x64xf32>
      %15 = arith.addf %12, %14 : vector<16x64xf32>
      %cst_14 = arith.constant 0.000000e+00 : f32
      %16 = vector.broadcast %cst_14 : f32 to vector<16x64xf32>
      %17 = arith.maximumf %15, %16 : vector<16x64xf32>
      %18 = arith.truncf %17 : vector<16x64xf32> to vector<16x64xbf16>
      %c0_15 = arith.constant 0 : index
      %c0_16 = arith.constant 0 : index
      %19 = vector.load %arg5[%c0_15, %c0_16] : memref<64x32xbf16, #tpu.memory_space<vmem>>, vector<64x32xbf16>
      %cst_17 = arith.constant dense<0.000000e+00> : vector<16x32xf32>
      %20 = tpu.matmul %18, %19, %cst_17 {dimension_numbers = #tpu.dot_dimension_numbers<[1], [0], [0], [1], [0, 0, 1, 1], [], []>} : vector<16x64xbf16>, vector<64x32xbf16>, vector<16x32xf32> -> vector<16x32xf32>
      %c0_18 = arith.constant 0 : index
      %c0_19 = arith.constant 0 : index
      %21 = vector.load %arg6[%c0_18, %c0_19] : memref<1x32xf32, #tpu.memory_space<vmem>>, vector<1x32xf32>
      %22 = vector.broadcast %21 : vector<1x32xf32> to vector<16x32xf32>
      %23 = arith.addf %20, %22 : vector<16x32xf32>
      %cst_20 = arith.constant 0.000000e+00 : f32
      %24 = vector.broadcast %cst_20 : f32 to vector<16x32xf32>
      %25 = arith.maximumf %23, %24 : vector<16x32xf32>
      %26 = arith.truncf %25 : vector<16x32xf32> to vector<16x32xbf16>
      %c0_21 = arith.constant 0 : index
      %c0_22 = arith.constant 0 : index
      %27 = vector.load %arg7[%c0_21, %c0_22] : memref<32x16xbf16, #tpu.memory_space<vmem>>, vector<32x16xbf16>
      %cst_23 = arith.constant dense<0.000000e+00> : vector<16x16xf32>
      %28 = tpu.matmul %26, %27, %cst_23 {dimension_numbers = #tpu.dot_dimension_numbers<[1], [0], [0], [1], [0, 0, 1, 1], [], []>} : vector<16x32xbf16>, vector<32x16xbf16>, vector<16x16xf32> -> vector<16x16xf32>
      %c0_24 = arith.constant 0 : index
      %c0_25 = arith.constant 0 : index
      %29 = vector.load %arg8[%c0_24, %c0_25] : memref<1x16xf32, #tpu.memory_space<vmem>>, vector<1x16xf32>
      %30 = vector.broadcast %29 : vector<1x16xf32> to vector<16x16xf32>
      %31 = arith.addf %28, %30 : vector<16x16xf32>
      %cst_26 = arith.constant 0.000000e+00 : f32
      %32 = vector.broadcast %cst_26 : f32 to vector<16x16xf32>
      %33 = arith.maximumf %31, %32 : vector<16x16xf32>
      %c0_27 = arith.constant 0 : index
      %c0_28 = arith.constant 0 : index
      %34 = vector.load %arg9[%c0_27, %c0_28] : memref<1x16xf32, #tpu.memory_space<vmem>>, vector<1x16xf32>
      %35 = vector.broadcast %34 : vector<1x16xf32> to vector<16x16xf32>
      %36 = arith.mulf %33, %35 : vector<16x16xf32>
      %cst_29 = arith.constant dense<0.000000e+00> : vector<16xf32>
      %37 = vector.multi_reduction <add>, %36, %cst_29 [1] : vector<16x16xf32> to vector<16xf32>
      %38 = vector.shape_cast %37 : vector<16xf32> to vector<16x1xf32>
      %c0_30 = arith.constant 0 : index
      %c0_31 = arith.constant 0 : index
      %39 = vector.load %arg10[%c0_30, %c0_31] : memref<1x1xf32, #tpu.memory_space<vmem>>, vector<1x1xf32>
      %40 = vector.broadcast %39 : vector<1x1xf32> to vector<16x1xf32>
      %41 = arith.addf %38, %40 : vector<16x1xf32>
      %c0_32 = arith.constant 0 : index
      %c0_33 = arith.constant 0 : index
      %42 = vector.load %arg11[%c0_32, %c0_33] : memref<16x1xf32, #tpu.memory_space<vmem>>, vector<16x1xf32>
      tpu.vector_store %arg11[%c0_32, %c0_33], %41 {strides = array<i32>} : memref<16x1xf32, #tpu.memory_space<vmem>>, vector<16x1xf32>,
    } else {
    }
    return
  }
  func.func @transform_0(%arg0: i32, %arg1: i32) -> (i32, i32) {
    %c0_i32 = arith.constant 0 : i32
    return %arg0, %arg1 : i32, i32
  }
  func.func @transform_1(%arg0: i32, %arg1: i32) -> (i32, i32) {
    %c0_i32 = arith.constant 0 : i32
    %c0_i32_0 = arith.constant 0 : i32
    return %arg1, %c0_i32 : i32, i32
  }
  func.func @transform_2(%arg0: i32, %arg1: i32) -> (i32, i32) {
    %c0_i32 = arith.constant 0 : i32
    %c0_i32_0 = arith.constant 0 : i32
    %c0_i32_1 = arith.constant 0 : i32
    return %c0_i32, %c0_i32_0 : i32, i32
  }
  func.func @transform_3(%arg0: i32, %arg1: i32) -> (i32, i32) {
    %c0_i32 = arith.constant 0 : i32
    %c0_i32_0 = arith.constant 0 : i32
    %c0_i32_1 = arith.constant 0 : i32
    return %c0_i32, %c0_i32_0 : i32, i32
  }
  func.func @transform_4(%arg0: i32, %arg1: i32) -> (i32, i32) {
    %c0_i32 = arith.constant 0 : i32
    %c0_i32_0 = arith.constant 0 : i32
    %c0_i32_1 = arith.constant 0 : i32
    return %c0_i32, %c0_i32_0 : i32, i32
  }
  func.func @transform_5(%arg0: i32, %arg1: i32) -> (i32, i32) {
    %c0_i32 = arith.constant 0 : i32
    %c0_i32_0 = arith.constant 0 : i32
    %c0_i32_1 = arith.constant 0 : i32
    return %c0_i32, %c0_i32_0 : i32, i32
  }
  func.func @transform_6(%arg0: i32, %arg1: i32) -> (i32, i32) {
    %c0_i32 = arith.constant 0 : i32
    %c0_i32_0 = arith.constant 0 : i32
    %c0_i32_1 = arith.constant 0 : i32
    return %c0_i32, %c0_i32_0 : i32, i32
  }
  func.func @transform_7(%arg0: i32, %arg1: i32) -> (i32, i32) {
    %c0_i32 = arith.constant 0 : i32
    %c0_i32_0 = arith.constant 0 : i32
    %c0_i32_1 = arith.constant 0 : i32
    return %c0_i32, %c0_i32_0 : i32, i32
  }
  func.func @transform_8(%arg0: i32, %arg1: i32) -> (i32, i32) {
    %c0_i32 = arith.constant 0 : i32
    %c0_i32_0 = arith.constant 0 : i32
    %c0_i32_1 = arith.constant 0 : i32
    return %c0_i32, %c0_i32_0 : i32, i32
  }
  func.func @transform_9(%arg0: i32, %arg1: i32) -> (i32, i32) {
    %c0_i32 = arith.constant 0 : i32
    %c0_i32_0 = arith.constant 0 : i32
    return %arg0, %c0_i32 : i32, i32
  }
}

</mosaic_0001>

<llo_original>
// kernel: tpu_custom_call.1
$region0: #{tpu_custom_call.1}
  #allocation0 [shape = 'u32[]', space=smem, size = 0x4, offset = 0x4, fixed_abs, tag = 'smem constant byte address 0x4 - core index']
  #allocation1 [shape = 'u32[144,128]{1,0:T(1,128)}', space=vmem, size = 0x12000, scoped, tag = 'internal scratch']
  #allocation2 [shape = 'f32[16,64]{1,0:T(8,128)}', space=vmem, size = 0x2000, scoped, tag = 'scratch operand']
  #allocation3 [shape = 'f32[1,1]{1,0:T(1,128)S(1)}', space=vmem, size = 0x200, scoped, tag = 'scoped memory for tpu_custom_call.1']
  %s0 = inlined_call_operand.vmem [shape: bf16[16,32], index: 0, kind: input, shape index: {}]
  %s1 = inlined_call_operand.vmem [shape: bf16[32,64], index: 1, kind: input, shape index: {}]
  %s2 = inlined_call_operand.vmem [shape: f32[1,64], index: 2, kind: input, shape index: {}]
  %s3 = inlined_call_operand.vmem [shape: bf16[64,32], index: 3, kind: input, shape index: {}]
  %s4 = inlined_call_operand.vmem [shape: f32[1,32], index: 4, kind: input, shape index: {}]
  %s5 = inlined_call_operand.vmem [shape: bf16[32,16], index: 5, kind: input, shape index: {}]
  %s6 = inlined_call_operand.vmem [shape: f32[1,16], index: 6, kind: input, shape index: {}]
  %s7 = inlined_call_operand.vmem [shape: f32[1,16], index: 7, kind: input, shape index: {}]
  %s8 = inlined_call_operand.<no memory space> [shape: f32[1,1], index: 8, kind: input, shape index: {}]
  %s9 = inlined_call_operand.vmem [shape: f32[16,1], index: 9, kind: output, shape index: {}]
  %s10 = sld [smem:[#allocation0]]
  $region54: #{tpu_custom_call.1} parent=0
    _
  %s12 = ssub.s32 1, %s10
  %s13 = scalar_select 0, %s12, %s10
  %v14 = vstv %s8
  %15 = vst [vmem:[#allocation3] sm:$0x1] %v14
  // Predicated region
  $region2: #{tpu_custom_call.1} parent=0 // pred_check
    _
  $region3: #{tpu_custom_call.1} parent=0 // pred_check_branch
    %17 = sbr.rel (0) target = $region5
  $region4: #{tpu_custom_call.1} parent=0 // pred_region
    _
  $region5: #{tpu_custom_call.1} parent=0 // pred_fallthru
    _
  // Predicated region
  $region6: #{tpu_custom_call.1} parent=0 // pred_check
    _
  $region7: #{tpu_custom_call.1} parent=0 // pred_check_branch
    %19 = sbr.rel (0) target = $region9
  $region8: #{tpu_custom_call.1} parent=0 // pred_region
    _
  $region9: #{tpu_custom_call.1} parent=0 // pred_fallthru
    _
  // Predicated region
  $region10: #{tpu_custom_call.1} parent=0 // pred_check
    _
  $region11: #{tpu_custom_call.1} parent=0 // pred_check_branch
    %21 = sbr.rel (0) target = $region13
  $region12: #{tpu_custom_call.1} parent=0 // pred_region
    _
  $region13: #{tpu_custom_call.1} parent=0 // pred_fallthru
    _
  // Predicated region
  $region14: #{tpu_custom_call.1} parent=0 // pred_check
    _
  $region15: #{tpu_custom_call.1} parent=0 // pred_check_branch
    %23 = sbr.rel (0) target = $region17
  $region16: #{tpu_custom_call.1} parent=0 // pred_region
    _
  $region17: #{tpu_custom_call.1} parent=0 // pred_fallthru
    _
  // Predicated region
  $region18: #{tpu_custom_call.1} parent=0 // pred_check
    _
  $region19: #{tpu_custom_call.1} parent=0 // pred_check_branch
    %25 = sbr.rel (0) target = $region21
  $region20: #{tpu_custom_call.1} parent=0 // pred_region
    _
  $region21: #{tpu_custom_call.1} parent=0 // pred_fallthru
    _
  // Predicated region
  $region22: #{tpu_custom_call.1} parent=0 // pred_check
    _
  $region23: #{tpu_custom_call.1} parent=0 // pred_check_branch
    %27 = sbr.rel (0) target = $region25
  $region24: #{tpu_custom_call.1} parent=0 // pred_region
    _
  $region25: #{tpu_custom_call.1} parent=0 // pred_fallthru
    _
  // Predicated region
  $region26: #{tpu_custom_call.1} parent=0 // pred_check
    _
  $region27: #{tpu_custom_call.1} parent=0 // pred_check_branch
    %29 = sbr.rel (0) target = $region29
  $region28: #{tpu_custom_call.1} parent=0 // pred_region
    _
  $region29: #{tpu_custom_call.1} parent=0 // pred_fallthru
    _
  // Predicated region
  $region30: #{tpu_custom_call.1} parent=0 // pred_check
    _
  $region31: #{tpu_custom_call.1} parent=0 // pred_check_branch
    %31 = sbr.rel (0) target = $region33
  $region32: #{tpu_custom_call.1} parent=0 // pred_region
    _
  $region33: #{tpu_custom_call.1} parent=0 // pred_fallthru
    _
  // Predicated region
  $region34: #{tpu_custom_call.1} parent=0 // pred_check
    _
  $region35: #{tpu_custom_call.1} parent=0 // pred_check_branch
    %33 = sbr.rel (0) target = $region37
  $region36: #{tpu_custom_call.1} parent=0 // pred_region
    _
  $region37: #{tpu_custom_call.1} parent=0 // pred_fallthru
    _
  %p35 = scmp.eq.s32.totalorder 0, 0
  // Predicated region
  $region38: #{tpu_custom_call.1} parent=0 // pred_check
    %p36 = pneg %p35
  $region39: #{tpu_custom_call.1} parent=0 // pred_check_branch
    %38 = sbr.rel (%p36) target = $region41
  $region40: #{tpu_custom_call.1} parent=0 // pred_region
    %vm39 = vcmask 523264
    %40 = vst.msk [vmem:[#allocation2] sm:$0xff] %vm39, 0.0
    %41 = vst.msk [vmem:[#allocation2 + $0x8] sm:$0xff] %vm39, 0.0
  $region41: #{tpu_custom_call.1} parent=0 // pred_fallthru
    _
  %v42 = vld [vmem:[#allocation2] sm:$0xff]
  %v43 = vld [vmem:[#allocation2 + $0x8] sm:$0xff]
  %v44 = vld [vmem:[%s0] sm:$0xf]
  %v45 = vld [vmem:[%s0 + $0x4] sm:$0xf]
  %v46 = vld [vmem:[%s1] sm:$0xf]
  %v47 = vld [vmem:[%s1 + $0x4] sm:$0xf]
  %v48 = vld [vmem:[%s1 + $0x8] sm:$0xf]
  %v49 = vld [vmem:[%s1 + $0xc] sm:$0xf]
  %v52 = vunpack.c.l.b16 %v44
  %v53 = vunpack.c.l.b16 %v45
  %v54 = vpack.c.b16 %v53, %v52
  %v59 = vunpack.c.l.b16 %v46
  %v60 = vunpack.c.l.b16 %v47
  %v61 = vunpack.c.l.b16 %v48
  %v62 = vunpack.c.l.b16 %v49
  %v63 = vpack.c.b16 %v60, %v59
  %v64 = vpack.c.b16 %v62, %v61
  %vm67 = vcmask 261120
  %v69 = vsel %vm67, %v54, 0
  %71 = vmatprep.subr.bf16.mxu0 0
  %72 = vmatpush1.bf16.msra.mxu0 %v63
  %73 = vmatprep.subr.bf16.mxu0 0
  %74 = vmatpush1.bf16.msra.mxu0 %v64
  %75 = vmatprep.subr.bf16.mxu0 0
  %76 = vmatpush1.bf16.msra.mxu0 0
  %77 = vmatprep.subr.bf16.mxu0 0
  %78 = vmatpush1.bf16.msra.mxu0 0
  %79 = vmatprep.subr.bf16.mxu0 0
  %80 = vmatpush1.bf16.msra.mxu0 0
  %81 = vmatprep.subr.bf16.mxu0 0
  %82 = vmatpush1.bf16.msra.mxu0 0
  %83 = vmatprep.subr.bf16.mxu0 0
  %84 = vmatpush1.bf16.msra.mxu0 0
  %85 = vmatprep.subr.bf16.mxu0 0
  %86 = vmatpush1.bf16.msra.mxu0 0
  %87 = vmatprep.subr.bf16.mxu0 0
  %88 = vmatpush1.bf16.msra.mxu0 0
  %89 = vmatprep.subr.bf16.mxu0 0
  %90 = vmatpush1.bf16.msra.mxu0 0
  %91 = vmatprep.subr.bf16.mxu0 0
  %92 = vmatpush1.bf16.msra.mxu0 0
  %93 = vmatprep.subr.bf16.mxu0 0
  %94 = vmatpush1.bf16.msra.mxu0 0
  %95 = vmatprep.subr.bf16.mxu0 0
  %96 = vmatpush1.bf16.msra.mxu0 0
  %97 = vmatprep.subr.bf16.mxu0 0
  %98 = vmatpush1.bf16.msra.mxu0 0
  %99 = vmatprep.subr.bf16.mxu0 0
  %100 = vmatpush1.bf16.msra.mxu0 0
  %101 = vmatprep.subr.bf16.mxu0 0
  %102 = vmatpush1.bf16.msra.mxu0 0
  %103 = vmatprep.mubr.bf16.mxu0 0
  %104 = vmatmul.mubr.bf16.gmra.mrb[0].mxu0 %v69
  %v105 = vpop.f32.mrb[0].mxu0
  %v106 = vadd.f32 0.0, %v105
  %v107 = vpop.f32.mrb[0].mxu0
  %v108 = vpop.f32.mrb[0].mxu0
  %v109 = vadd.f32 0.0, %v108
  %v110 = vpop.f32.mrb[0].mxu0
  %111 = vdwg.mxu0
  %v112 = vadd.f32 %v42, %v106
  %v113 = vadd.f32 %v43, %v109
  %vm114 = vcmask 523264
  %115 = vst.msk [vmem:[#allocation2] sm:$0xff] %vm114, %v112
  %116 = vst.msk [vmem:[#allocation2 + $0x8] sm:$0xff] %vm114, %v113
  // Predicated region
  $region42: #{tpu_custom_call.1} parent=0 // pred_check
    %p117 = pneg %p35
  $region43: #{tpu_custom_call.1} parent=0 // pred_check_branch
    %119 = sbr.rel (%p117) target = $region45
  $region44: #{tpu_custom_call.1} parent=0 // pred_region
    %v120 = vld [vmem:[#allocation2] sm:$0xff]
    %v121 = vld [vmem:[#allocation2 + $0x8] sm:$0xff]
    %v122 = vld [vmem:[%s2] sm:$0x1]
    %v124 = vlaneseq
    %v125 = vshrl.u32 %v124, 7
    %v126 = vsub.s32 0, %v125
    %v127 = vrot.slane %v122, %v126
    %v129 = vadd.f32 %v120, %v127
    %v130 = vadd.f32 %v121, %v127
    %v131 = vmax.f32 %v129, 0.0
    %v132 = vmax.f32 %v130, 0.0
    %v133 = vpack.c.bf16 %v132, %v131
    %v134 = vld [vmem:[%s3] sm:$0xf]
    %v135 = vld [vmem:[%s3 + $0x4] sm:$0xf]
    %v136 = vld [vmem:[%s3 + $0x8] sm:$0xf]
    %v137 = vld [vmem:[%s3 + $0xc] sm:$0xf]
    %v138 = vld [vmem:[%s3 + $0x10] sm:$0xf]
    %v139 = vld [vmem:[%s3 + $0x14] sm:$0xf]
    %v140 = vld [vmem:[%s3 + $0x18] sm:$0xf]
    %v141 = vld [vmem:[%s3 + $0x1c] sm:$0xf]
    %v142 = vld [vmem:[%s4] sm:$0x1]
    %v144 = vlaneseq
    %v145 = vshrl.u32 %v144, 7
    %v146 = vsub.s32 0, %v145
    %v147 = vrot.slane %v142, %v146
    %v157 = vunpack.c.l.b16 %v134
    %v158 = vunpack.c.l.b16 %v135
    %v159 = vunpack.c.l.b16 %v136
    %v160 = vunpack.c.l.b16 %v137
    %v161 = vunpack.c.l.b16 %v138
    %v162 = vunpack.c.l.b16 %v139
    %v163 = vunpack.c.l.b16 %v140
    %v164 = vunpack.c.l.b16 %v141
    %v165 = vpack.c.b16 %v158, %v157
    %v166 = vpack.c.b16 %v160, %v159
    %v167 = vpack.c.b16 %v162, %v161
    %v168 = vpack.c.b16 %v164, %v163
    %v174 = vsel %vm114, %v133, 0
    %176 = vmatprep.subr.bf16.mxu0 0
    %177 = vmatpush1.bf16.msra.mxu0 %v165
    %178 = vmatprep.subr.bf16.mxu0 0
    %179 = vmatpush1.bf16.msra.mxu0 %v166
    %180 = vmatprep.subr.bf16.mxu0 0
    %181 = vmatpush1.bf16.msra.mxu0 %v167
    %182 = vmatprep.subr.bf16.mxu0 0
    %183 = vmatpush1.bf16.msra.mxu0 %v168
    %184 = vmatprep.subr.bf16.mxu0 0
    %185 = vmatpush1.bf16.msra.mxu0 0
    %186 = vmatprep.subr.bf16.mxu0 0
    %187 = vmatpush1.bf16.msra.mxu0 0
    %188 = vmatprep.subr.bf16.mxu0 0
    %189 = vmatpush1.bf16.msra.mxu0 0
    %190 = vmatprep.subr.bf16.mxu0 0
    %191 = vmatpush1.bf16.msra.mxu0 0
    %192 = vmatprep.subr.bf16.mxu0 0
    %193 = vmatpush1.bf16.msra.mxu0 0
    %194 = vmatprep.subr.bf16.mxu0 0
    %195 = vmatpush1.bf16.msra.mxu0 0
    %196 = vmatprep.subr.bf16.mxu0 0
    %197 = vmatpush1.bf16.msra.mxu0 0
    %198 = vmatprep.subr.bf16.mxu0 0
    %199 = vmatpush1.bf16.msra.mxu0 0
    %200 = vmatprep.subr.bf16.mxu0 0
    %201 = vmatpush1.bf16.msra.mxu0 0
    %202 = vmatprep.subr.bf16.mxu0 0
    %203 = vmatpush1.bf16.msra.mxu0 0
    %204 = vmatprep.subr.bf16.mxu0 0
    %205 = vmatpush1.bf16.msra.mxu0 0
    %206 = vmatprep.subr.bf16.mxu0 0
    %207 = vmatpush1.bf16.msra.mxu0 0
    %208 = vmatprep.mubr.bf16.mxu0 0
    %209 = vmatmul.mubr.bf16.gmra.mrb[0].mxu0 %v174
    %v210 = vpop.f32.mrb[0].mxu0
    %v211 = vadd.f32 %v147, %v210
    %v212 = vpop.f32.mrb[0].mxu0
    %v213 = vpop.f32.mrb[0].mxu0
    %v214 = vadd.f32 %v147, %v213
    %v215 = vpop.f32.mrb[0].mxu0
    %216 = vdwg.mxu0
    %v217 = vmax.f32 %v211, 0.0
    %v218 = vmax.f32 %v214, 0.0
    %v219 = vpack.c.bf16 %v218, %v217
    %v220 = vld [vmem:[%s5] sm:$0xf]
    %v221 = vld [vmem:[%s5 + $0x4] sm:$0xf]
    %v222 = vld [vmem:[%s5 + $0x8] sm:$0xf]
    %v223 = vld [vmem:[%s5 + $0xc] sm:$0xf]
    %v224 = vld [vmem:[%s6] sm:$0x1]
    %v226 = vlaneseq
    %v227 = vshrl.u32 %v226, 7
    %v228 = vsub.s32 0, %v227
    %v229 = vrot.slane %v224, %v228
    %v235 = vunpack.c.l.b16 %v220
    %v236 = vunpack.c.l.b16 %v221
    %v237 = vunpack.c.l.b16 %v222
    %v238 = vunpack.c.l.b16 %v223
    %v239 = vpack.c.b16 %v236, %v235
    %v240 = vpack.c.b16 %v238, %v237
    %v244 = vsel %vm67, %v219, 0
    %246 = vmatprep.subr.bf16.mxu0 0
    %247 = vmatpush1.bf16.msra.mxu0 %v239
    %248 = vmatprep.subr.bf16.mxu0 0
    %249 = vmatpush1.bf16.msra.mxu0 %v240
    %250 = vmatprep.subr.bf16.mxu0 0
    %251 = vmatpush1.bf16.msra.mxu0 0
    %252 = vmatprep.subr.bf16.mxu0 0
    %253 = vmatpush1.bf16.msra.mxu0 0
    %254 = vmatprep.subr.bf16.mxu0 0
    %255 = vmatpush1.bf16.msra.mxu0 0
    %256 = vmatprep.subr.bf16.mxu0 0
    %257 = vmatpush1.bf16.msra.mxu0 0
    %258 = vmatprep.subr.bf16.mxu0 0
    %259 = vmatpush1.bf16.msra.mxu0 0
    %260 = vmatprep.subr.bf16.mxu0 0
    %261 = vmatpush1.bf16.msra.mxu0 0
    %262 = vmatprep.subr.bf16.mxu0 0
    %263 = vmatpush1.bf16.msra.mxu0 0
    %264 = vmatprep.subr.bf16.mxu0 0
    %265 = vmatpush1.bf16.msra.mxu0 0
    %266 = vmatprep.subr.bf16.mxu0 0
    %267 = vmatpush1.bf16.msra.mxu0 0
    %268 = vmatprep.subr.bf16.mxu0 0
    %269 = vmatpush1.bf16.msra.mxu0 0
    %270 = vmatprep.subr.bf16.mxu0 0
    %271 = vmatpush1.bf16.msra.mxu0 0
    %272 = vmatprep.subr.bf16.mxu0 0
    %273 = vmatpush1.bf16.msra.mxu0 0
    %274 = vmatprep.subr.bf16.mxu0 0
    %275 = vmatpush1.bf16.msra.mxu0 0
    %276 = vmatprep.subr.bf16.mxu0 0
    %277 = vmatpush1.bf16.msra.mxu0 0
    %278 = vmatprep.mubr.bf16.mxu0 0
    %279 = vmatmul.mubr.bf16.gmra.mrb[0].mxu0 %v244
    %v280 = vpop.f32.mrb[0].mxu0
    %v281 = vadd.f32 %v229, %v280
    %v282 = vpop.f32.mrb[0].mxu0
    %v283 = vpop.f32.mrb[0].mxu0
    %v284 = vadd.f32 %v229, %v283
    %v285 = vpop.f32.mrb[0].mxu0
    %286 = vdwg.mxu0
    %v287 = vmax.f32 %v281, 0.0
    %v288 = vmax.f32 %v284, 0.0
    %v289 = vld [vmem:[%s7] sm:$0x1]
    %v291 = vlaneseq
    %v292 = vshrl.u32 %v291, 7
    %v293 = vsub.s32 0, %v292
    %v294 = vrot.slane %v289, %v293
    %v296 = vmul.f32 %v287, %v294
    %v297 = vmul.f32 %v288, %v294
    %vm298 = vcmask 130048
    %v299 = vsel %vm298, %v296, 0.0
    %300 = vadd.xlane.f32.xlu0 %v299
    %v301 = vpop.xlane.xlu0 %300
    %v302 = vsel %vm298, %v297, 0.0
    %303 = vadd.xlane.f32.xlu0 %v302
    %v304 = vpop.xlane.xlu0 %303
    %v305 = vld [vmem:[#allocation3] sm:$0x1]
    %v307 = vlaneseq
    %v308 = vshrl.u32 %v307, 7
    %v309 = vsub.s32 0, %v308
    %v310 = vrot.slane %v305, %v309
    %v312 = vadd.f32 %v301, %v310
    %v313 = vadd.f32 %v304, %v310
    %vm314 = vcmask 7168
    %315 = vst.msk [vmem:[%s9] sm:$0xff] %vm314, %v312
    %316 = vst.msk [vmem:[%s9 + $0x8] sm:$0xff] %vm314, %v313
  $region45: #{tpu_custom_call.1} parent=0 // pred_fallthru
    _
  // Predicated region
  $region46: #{tpu_custom_call.1} parent=0 // pred_check
    _
  $region47: #{tpu_custom_call.1} parent=0 // pred_check_branch
    %318 = sbr.rel (0) target = $region49
  $region48: #{tpu_custom_call.1} parent=0 // pred_region
    _
  $region49: #{tpu_custom_call.1} parent=0 // pred_fallthru
    _
  // Predicated region
  $region50: #{tpu_custom_call.1} parent=0 // pred_check
    _
  $region51: #{tpu_custom_call.1} parent=0 // pred_check_branch
    %320 = sbr.rel (0) target = $region53
  $region52: #{tpu_custom_call.1} parent=0 // pred_region
    _
  $region53: #{tpu_custom_call.1} parent=0 // pred_fallthru
    _

</llo_original>
